<compile_context>
chip_gen: v7x
topology: tpu7x:2x2x1
jax: 0.10.0
libtpu: 0.0.40
codegen_flags: <defaults>
</compile_context>

<pallas_src>
import jax
import jax.numpy as jnp
from jax.experimental import pallas as pl
from jax.experimental.pallas import tpu as pltpu


def _instance_detector_kernel(x_ref, w_ref, b_ref, o_ref):
    # x_ref: [tm, D] (VMEM), w_ref: [1, D] (VMEM), b_ref: f32[1] (SMEM),
    # o_ref: [tm, 1] (VMEM)
    x = x_ref[...]                                   # [tm, D]
    w = w_ref[...]                                   # [1, D] -> broadcasts over rows
    # VPU elementwise multiply + XLU cross-lane reduction (no MXU involved).
    z = jnp.sum(x * w, axis=-1, keepdims=True)       # [tm, 1] f32
    z = z + b_ref[0]                                 # scalar bias from SMEM (1-D, 4 B)
    # Exact sigmoid: exp on EUP, one f32 divide.  Saturates correctly at 0/1.
    o_ref[...] = (1.0 / (1.0 + jnp.exp(-z))).astype(o_ref.dtype)


def instance_detector_forward(state, weight, bias, *, row_tile=2048):
    """state: [N, D] f32, weight: [1, D] f32, bias: [1] f32 -> prob [N, 1] f32."""
    n, d = state.shape
    w = weight.reshape(1, d).astype(jnp.float32)     # lane-dense [1, D]; no transpose
    b = bias.reshape(1).astype(jnp.float32)          # 1-D scalar for SMEM (no 2-D padding)

    cost = pl.CostEstimate(
        flops=2 * n * d,
        transcendentals=n,
        bytes_accessed=(n * d + d + n) * 4,
    )

    # Small-batch path: grid-less, whole arrays resident in VMEM.
    if n <= row_tile or n % 8 != 0:
        return pl.pallas_call(
            _instance_detector_kernel,
            out_shape=jax.ShapeDtypeStruct((n, 1), jnp.float32),
            in_specs=[
                pl.BlockSpec(memory_space=pltpu.VMEM),   # state, whole array
                pl.BlockSpec(memory_space=pltpu.VMEM),   # weight [1, D]
                pl.BlockSpec(memory_space=pltpu.SMEM),   # bias f32[1]
            ],
            out_specs=pl.BlockSpec(memory_space=pltpu.VMEM),
            cost_estimate=cost,
        )(state, w, b)

    # Scaled path: 1-D "parallel" grid over rows (HBM-read-bound on `state`).
    tm = row_tile
    while n % tm != 0:        # n % 8 == 0 here, so this terminates at tm >= 8
        tm //= 2
    grid = (n // tm,)
    return pl.pallas_call(
        _instance_detector_kernel,
        out_shape=jax.ShapeDtypeStruct((n, 1), jnp.float32),
        grid=grid,
        in_specs=[
            pl.BlockSpec((tm, d), lambda i: (i, 0)),     # row tile of state
            pl.BlockSpec((1, d), lambda i: (0, 0)),      # weight resident across steps
            pl.BlockSpec(memory_space=pltpu.SMEM),       # bias f32[1], whole array
        ],
        out_specs=pl.BlockSpec((tm, 1), lambda i: (i, 0)),
        compiler_params=pltpu.CompilerParams(
            dimension_semantics=("parallel",),           # shards rows across TCs (v7x 2x)
        ),
        cost_estimate=cost,
    )(state, w, b)


if __name__ == "__main__":
    # args: sent_dim=32, ent_dim=16  ->  state_dim = 32*2 + 16 = 80
    sent_dim, ent_dim = 32, 16
    state_dim = sent_dim * 2 + ent_dim
    batch = 8

    key = jax.random.PRNGKey(0)
    kx, kw, kb, kx2 = jax.random.split(key, 4)

    # Deterministic parameter init (mimics nn.Linear's uniform(-1/sqrt(D), 1/sqrt(D)))
    bound = 1.0 / (state_dim ** 0.5)
    weight = jax.random.uniform(kw, (1, state_dim), jnp.float32, -bound, bound)
    bias = jax.random.uniform(kb, (1,), jnp.float32, -bound, bound)

    # --- small-batch (module-sized) path ---
    state = jax.random.normal(kx, (batch, state_dim), jnp.float32)
    prob = instance_detector_forward(state, weight, bias)
    prob = jax.block_until_ready(prob)
    ref = jax.nn.sigmoid(state @ weight.T + bias)
    assert prob.shape == (batch, 1)
    assert jnp.allclose(prob, ref, atol=1e-5, rtol=1e-5)

    # --- scaled path (exercises the row-tiled "parallel" grid) ---
    big_n = 1024
    state_big = jax.random.normal(kx2, (big_n, state_dim), jnp.float32)
    prob_big = instance_detector_forward(state_big, weight, bias, row_tile=256)
    prob_big = jax.block_until_ready(prob_big)
    ref_big = jax.nn.sigmoid(state_big @ weight.T + bias)
    assert prob_big.shape == (big_n, 1)
    assert jnp.allclose(prob_big, ref_big, atol=1e-5, rtol=1e-5)

    print("KERNEL_OK")
</pallas_src>

<mosaic_0001>
module attributes {stable_mosaic.version = 11 : i64} {
  func.func @_instance_detector_kernel(%arg0: memref<8x80xf32, #tpu.memory_space<vmem>>, %arg1: memref<1x80xf32, #tpu.memory_space<vmem>>, %arg2: memref<1xf32, #tpu.memory_space<smem>>, %arg3: memref<8x1xf32, #tpu.memory_space<vmem>>) attributes {dimension_semantics = [], scalar_prefetch = 0 : i64, scratch_operands = 0 : i64, tpu.core_type = #tpu.core_type<tc>} {
    %c0 = arith.constant 0 : index
    %c0_0 = arith.constant 0 : index
    %0 = vector.load %arg0[%c0, %c0_0] : memref<8x80xf32, #tpu.memory_space<vmem>>, vector<8x80xf32>
    %c0_1 = arith.constant 0 : index
    %c0_2 = arith.constant 0 : index
    %1 = vector.load %arg1[%c0_1, %c0_2] : memref<1x80xf32, #tpu.memory_space<vmem>>, vector<1x80xf32>
    %2 = vector.broadcast %1 : vector<1x80xf32> to vector<8x80xf32>
    %3 = arith.mulf %0, %2 : vector<8x80xf32>
    %cst = arith.constant dense<0.000000e+00> : vector<8xf32>
    %4 = vector.multi_reduction <add>, %3, %cst [1] : vector<8x80xf32> to vector<8xf32>
    %5 = vector.shape_cast %4 : vector<8xf32> to vector<8x1xf32>
    %c0_3 = arith.constant 0 : index
    %6 = memref.load %arg2[%c0_3] : memref<1xf32, #tpu.memory_space<smem>>
    %7 = vector.broadcast %6 : f32 to vector<8x1xf32>
    %8 = arith.addf %5, %7 : vector<8x1xf32>
    %cst_4 = arith.constant 0.000000e+00 : f32
    %9 = vector.broadcast %cst_4 : f32 to vector<8x1xf32>
    %10 = arith.subf %9, %8 : vector<8x1xf32>
    %11 = math.exp %10 : vector<8x1xf32>
    %cst_5 = arith.constant 1.000000e+00 : f32
    %12 = vector.broadcast %cst_5 : f32 to vector<8x1xf32>
    %13 = arith.addf %12, %11 : vector<8x1xf32>
    %cst_6 = arith.constant 1.000000e+00 : f32
    %14 = vector.broadcast %cst_6 : f32 to vector<8x1xf32>
    %15 = arith.divf %14, %13 : vector<8x1xf32>
    %c0_7 = arith.constant 0 : index
    %c0_8 = arith.constant 0 : index
    %16 = vector.load %arg3[%c0_7, %c0_8] : memref<8x1xf32, #tpu.memory_space<vmem>>, vector<8x1xf32>
    tpu.vector_store %arg3[%c0_7, %c0_8], %15 {strides = array<i32>} : memref<8x1xf32, #tpu.memory_space<vmem>>, vector<8x1xf32>,
    return
  }
}

</mosaic_0001>

<llo_original>
// kernel: tpu_custom_call.1
$region0: #{tpu_custom_call.1}
  #allocation0 [shape = 'u32[]', space=smem, size = 0x4, offset = 0x4, fixed_abs, tag = 'smem constant byte address 0x4 - core index']
  #allocation1 [shape = 'u32[144,128]{1,0:T(1,128)}', space=vmem, size = 0x12000, scoped, tag = 'internal scratch']
  #allocation2 [shape = 'f32[1]{0:T(128)S(6)}', space=smem, size = 0x200, scoped, tag = 'scoped memory for tpu_custom_call.1']
  %s0 = inlined_call_operand.hbm [shape: f32[8,80], index: 0, kind: input, shape index: {}]
  %s1 = inlined_call_operand.vmem [shape: f32[1,80], index: 1, kind: input, shape index: {}]
  %s2 = inlined_call_operand.<no memory space> [shape: f32[1], index: 2, kind: input, shape index: {}]
  %s3 = inlined_call_operand.vmem [shape: f32[8,1], index: 3, kind: output, shape index: {}]
  %s4 = sld [smem:[#allocation0]]
  $region26: #{tpu_custom_call.1} parent=0
    _
  %s6 = ssub.s32 1, %s4
  %s7 = scalar_select 0, %s6, %s4
  %8 = sst [smem:[#allocation2]] %s2
  $region1: #{tpu_custom_call.1} parent=0
    #allocation3 [shape = 'u8[4096]{0}', space=vmem, size = 0x1000, scoped, tag = 'input window, operand 0, single buffered']
    #allocation4 [shape = 's32[1]{0}', space=sflag, size = 0x4, scoped, tag = 'scoped memory for tpu_custom_call.1']
    %9 = vsyncpa [#allocation4], 0
    // Predicated region
    $region2: #{tpu_custom_call.1} parent=1 // pred_check
      _
    $region3: #{tpu_custom_call.1} parent=1 // pred_check_branch
      %11 = sbr.rel (0) target = $region5
    $region4: #{tpu_custom_call.1} parent=1 // pred_region
      %s13 = ssub.s32 128, 128
      %14 = vsyncadd [#allocation4], %s13
      %s16 = sshll.u32 [#allocation3], 4
      %s17 = int_to_ptr.vmem [resolvable:$true] %s16
      %19 = dma.hbm_to_vmem [thread:$0]  %s0, 128, %s17, [#allocation4]
    $region5: #{tpu_custom_call.1} parent=1 // pred_fallthru
      _
    // Predicated region
    $region6: #{tpu_custom_call.1} parent=1 // pred_check
      _
    $region7: #{tpu_custom_call.1} parent=1 // pred_check_branch
      %21 = sbr.rel (0) target = $region9
    $region8: #{tpu_custom_call.1} parent=1 // pred_region
      _
    $region9: #{tpu_custom_call.1} parent=1 // pred_fallthru
      _
    // Predicated region
    $region10: #{tpu_custom_call.1} parent=1 // pred_check
      _
    $region11: #{tpu_custom_call.1} parent=1 // pred_check_branch
      %23 = sbr.rel (0) target = $region13
    $region12: #{tpu_custom_call.1} parent=1 // pred_region
      _
    $region13: #{tpu_custom_call.1} parent=1 // pred_fallthru
      _
    // Predicated region
    $region14: #{tpu_custom_call.1} parent=1 // pred_check
      _
    $region15: #{tpu_custom_call.1} parent=1 // pred_check_branch
      %25 = sbr.rel (0) target = $region17
    $region16: #{tpu_custom_call.1} parent=1 // pred_region
      %26 = dma.done [#allocation4], 128
    $region17: #{tpu_custom_call.1} parent=1 // pred_fallthru
      _
    %v27 = vld [vmem:[#allocation3] sm:$0xff]
    %v28 = vld [vmem:[%s1] sm:$0x1]
    %v30 = vlaneseq
    %v31 = vshrl.u32 %v30, 7
    %v32 = vsub.s32 0, %v31
    %v33 = vrot.slane %v28, %v32
    %v35 = vmul.f32 %v27, %v33
    %vm36 = vcmask 654336
    %v37 = vsel %vm36, %v35, 0.0
    %38 = vadd.xlane.f32.xlu0 %v37
    %v39 = vpop.xlane.xlu0 %38
    %s40 = sld [smem:[#allocation2]]
    %v41 = vstv %s40
    %v42 = vadd.f32 %v39, %v41
    %v43 = vsub.f32 0.0, %v42
    %v44 = vmul.f32 %v43, 1.442695
    %v45 = vpow.pop %v44
    %v46 = vadd.f32 %v45, 1.0
    %v47 = vrcp.pop %v46
    %v48 = vmul.f32 1.0, %v47
    %vm49 = vcmask 7168
    %50 = vst.msk [vmem:[%s3] sm:$0xff] %vm49, %v48
    // Predicated region
    $region18: #{tpu_custom_call.1} parent=1 // pred_check
      _
    $region19: #{tpu_custom_call.1} parent=1 // pred_check_branch
      %52 = sbr.rel (0) target = $region21
    $region20: #{tpu_custom_call.1} parent=1 // pred_region
      _
    $region21: #{tpu_custom_call.1} parent=1 // pred_fallthru
      _
    // Predicated region
    $region22: #{tpu_custom_call.1} parent=1 // pred_check
      _
    $region23: #{tpu_custom_call.1} parent=1 // pred_check_branch
      %54 = sbr.rel (0) target = $region25
    $region24: #{tpu_custom_call.1} parent=1 // pred_region
      _
    $region25: #{tpu_custom_call.1} parent=1 // pred_fallthru
      _
    %55 = vsyncpa [#allocation4], 1

</llo_original>
